<compile_context>
chip_gen: v7x
topology: tpu7x:2x2x1
jax: 0.10.0
libtpu: 0.0.40
codegen_flags: <defaults>
</compile_context>

<pallas_src>
import math

import jax
import jax.numpy as jnp
from jax.experimental import pallas as pl
from jax.experimental.pallas import tpu as pltpu


_NUM_DMA_SEMS = 8                      # small semaphore pool shared round-robin by row DMAs
_LANE = 128                            # lane width: keep output last dim lane-dense
_SUBLANE = 8                           # token tile must be a multiple of 8 (sublane-dense)
_MAX_TILE_TOKENS = 512
_VMEM_TILE_BUDGET = 12 * 1024 * 1024   # ~ gather scratch + double-buffered out block


def _round_up(x: int, m: int) -> int:
    return ((x + m - 1) // m) * m


def _make_embed_kernel(scale: float, tile_tokens: int):
    def embed_kernel(ids_ref, table_hbm, out_ref, rows_vmem, sems):
        # ids_ref   : SMEM (num_tokens_padded,) int32   (scalar prefetch)
        # table_hbm : HBM  (vocab, d_pad)                (memory_space=pl.ANY, manual DMA)
        # out_ref   : VMEM (tile_tokens, d_pad)          output block for this tile
        # rows_vmem : VMEM (tile_tokens, d_pad)          gather scratch
        # sems      : DMA semaphores, shape (_NUM_DMA_SEMS,)
        base = pl.program_id(0) * tile_tokens

        # Issue all row gathers for this tile -> up to tile_tokens DMAs in flight.
        @pl.loop(0, tile_tokens)
        def _issue(t):
            tok = ids_ref[base + t]
            pltpu.make_async_copy(
                table_hbm.at[pl.ds(tok, 1), :],
                rows_vmem.at[pl.ds(t, 1), :],
                sems.at[t % _NUM_DMA_SEMS],
            ).start()

        # Wait for all of them (same (1, d_pad) shape => same byte count per wait).
        @pl.loop(0, tile_tokens)
        def _wait(t):
            pltpu.make_async_copy(
                table_hbm.at[pl.ds(0, 1), :],
                rows_vmem.at[pl.ds(t, 1), :],
                sems.at[t % _NUM_DMA_SEMS],
            ).wait()

        # Scale the whole tile: one dense (tile_tokens, d_pad) VPU multiply + store.
        rows = rows_vmem[...]
        out_ref[...] = (rows.astype(jnp.float32) * scale).astype(out_ref.dtype)

    return embed_kernel


def embeddings_forward(x_ids: jax.Array, table: jax.Array, *, tile_tokens: int | None = None) -> jax.Array:
    """Pallas equivalent of Embeddings.forward: lut(x) * sqrt(d_model).

    x_ids: (batch, seq) int token ids
    table: (vocab, d_model) embedding weights
    returns: (batch, seq, d_model) with the same dtype as `table`
    """
    batch, seq = x_ids.shape
    vocab, d_model = table.shape
    num_tokens = batch * seq
    scale = math.sqrt(d_model)  # scale uses the true d_model, not the padded one

    # Lane-dense output: pad d_model up to a multiple of 128 if needed (zeros are sliced off).
    d_pad = _round_up(d_model, _LANE)
    if d_pad != d_model:
        table = jnp.pad(table, ((0, 0), (0, d_pad - d_model)))

    itemsize = jnp.dtype(table.dtype).itemsize
    row_bytes = d_pad * itemsize

    if tile_tokens is None:
        # rows scratch + (double-buffered) output block ~= 3 * T * row_bytes.
        t_budget = max(_SUBLANE, _VMEM_TILE_BUDGET // (3 * row_bytes))
        tile_tokens = min(_MAX_TILE_TOKENS, t_budget, _round_up(num_tokens, _SUBLANE))
    tile_tokens = max(_SUBLANE, (tile_tokens // _SUBLANE) * _SUBLANE)

    num_tokens_pad = _round_up(num_tokens, tile_tokens)
    num_tiles = num_tokens_pad // tile_tokens

    # Bounds safety: clamp ids; pad the flat id vector to a whole number of tiles (pad id 0 is valid).
    ids_flat = jnp.clip(x_ids.reshape(num_tokens).astype(jnp.int32), 0, vocab - 1)
    ids_flat = jnp.pad(ids_flat, (0, num_tokens_pad - num_tokens))

    kernel = _make_embed_kernel(scale, tile_tokens)

    grid_spec = pltpu.PrefetchScalarGridSpec(
        num_scalar_prefetch=1,
        grid=(num_tiles,),
        in_specs=[pl.BlockSpec(memory_space=pl.ANY)],  # table stays in HBM, gathered manually
        out_specs=pl.BlockSpec((tile_tokens, d_pad), lambda i, ids: (i, 0)),
        scratch_shapes=[
            pltpu.VMEM((tile_tokens, d_pad), table.dtype),
            pltpu.SemaphoreType.DMA((_NUM_DMA_SEMS,)),
        ],
    )

    cost = pl.CostEstimate(
        flops=num_tokens_pad * d_pad,
        transcendentals=0,
        bytes_accessed=2 * num_tokens_pad * d_pad * itemsize + num_tokens_pad * 4,
    )

    out_flat = pl.pallas_call(
        kernel,
        out_shape=jax.ShapeDtypeStruct((num_tokens_pad, d_pad), table.dtype),
        grid_spec=grid_spec,
        compiler_params=pltpu.CompilerParams(
            # Each tile is self-contained, so the token axis is safely parallel
            # (v7x: sharded across both TensorCores; harmless on v5e/v6e).
            dimension_semantics=("parallel",),
            vmem_limit_bytes=32 * 1024 * 1024,
        ),
        cost_estimate=cost,
    )(ids_flat, table)

    out = out_flat[:num_tokens, :d_model]
    return out.reshape(batch, seq, d_model)


if __name__ == "__main__":
    # Small deterministic setup consistent with Embeddings(d_model, vocab).
    d_model = 32
    vocab = 11
    batch = 2
    seq = 8

    key = jax.random.PRNGKey(0)
    k_table, k_ids = jax.random.split(key)

    # Deterministic "parameter init" (nn.Embedding uses N(0,1) by default).
    table = jax.random.normal(k_table, (vocab, d_model), dtype=jnp.float32)
    x_ids = jax.random.randint(k_ids, (batch, seq), 0, vocab, dtype=jnp.int32)

    out = embeddings_forward(x_ids, table)
    out = jax.block_until_ready(out)

    # Reference check in plain JAX (same math as the PyTorch module).
    ref = table[x_ids] * math.sqrt(d_model)
    assert out.shape == (batch, seq, d_model)
    assert jnp.allclose(out, ref, atol=1e-6, rtol=1e-6)

    print("KERNEL_OK")
</pallas_src>

<mosaic_0001>
module attributes {stable_mosaic.version = 11 : i64} {
  func.func @embed_kernel(%arg0: i32, %arg1: memref<16xi32, #tpu.memory_space<smem>>, %arg2: memref<11x128xf32, #tpu.memory_space<any>>, %arg3: memref<16x128xf32, #tpu.memory_space<vmem>>, %arg4: memref<16x128xf32, #tpu.memory_space<vmem>>, %arg5: memref<8x!tpu.dma_semaphore, #tpu.memory_space<semaphore_mem>>) attributes {dimension_semantics = [#tpu.dimension_semantics<parallel>], iteration_bounds = array<i64: 1>, scalar_prefetch = 1 : i64, scratch_operands = 2 : i64, tpu.core_type = #tpu.core_type<tc>, window_params = [{}, {transform_indices = @transform_1, window_bounds = array<i64: 16, 128>}]} {
    %c16_i32 = arith.constant 16 : i32
    %0 = arith.muli %arg0, %c16_i32 : i32
    %c0_i32 = arith.constant 0 : i32
    %c16_i32_0 = arith.constant 16 : i32
    %1 = arith.addi %c0_i32, %c16_i32_0 : i32
    %c1_i32 = arith.constant 1 : i32
    scf.for %arg6 = %c0_i32 to %1 step %c1_i32  : i32 {
      %c1_i32_9 = arith.constant 1 : i32
      %7 = arith.muli %arg6, %c1_i32_9 : i32
      %c0_i32_10 = arith.constant 0 : i32
      %8 = arith.addi %c0_i32_10, %7 : i32
      %9 = arith.addi %0, %8 : i32
      %10 = arith.index_cast %9 : i32 to index
      %11 = memref.load %arg1[%10] : memref<16xi32, #tpu.memory_space<smem>>
      %c8_i32 = arith.constant 8 : i32
      %c0_i32_11 = arith.constant 0 : i32
      %12 = arith.cmpi eq, %c8_i32, %c0_i32_11 : i32
      %c1_i32_12 = arith.constant 1 : i32
      %13 = arith.select %12, %c1_i32_12, %c8_i32 : i32
      %14 = arith.remsi %8, %13 : i32
      %c0_i32_13 = arith.constant 0 : i32
      %15 = arith.cmpi ne, %14, %c0_i32_13 : i32
      %c0_i32_14 = arith.constant 0 : i32
      %16 = arith.cmpi slt, %14, %c0_i32_14 : i32
      %c0_i32_15 = arith.constant 0 : i32
      %17 = arith.cmpi slt, %13, %c0_i32_15 : i32
      %18 = arith.xori %16, %17 : i1
      %19 = arith.andi %18, %15 : i1
      %20 = arith.addi %14, %13 : i32
      %21 = arith.select %19, %20, %14 : i32
      %c0_i32_16 = arith.constant 0 : i32
      %22 = tpu.memref_slice %arg2[%11, %c0_i32_16] : memref<11x128xf32, #tpu.memory_space<any>> -> memref<1x128xf32, #tpu.memory_space<any>>
      %c0_i32_17 = arith.constant 0 : i32
      %23 = tpu.memref_slice %arg4[%8, %c0_i32_17] : memref<16x128xf32, #tpu.memory_space<vmem>> -> memref<1x128xf32, #tpu.memory_space<vmem>>
      %24 = tpu.memref_slice %arg5[%21] : memref<8x!tpu.dma_semaphore, #tpu.memory_space<semaphore_mem>> -> memref<1x!tpu.dma_semaphore, #tpu.memory_space<semaphore_mem>>
      %25 = tpu.memref_squeeze %24 : memref<1x!tpu.dma_semaphore, #tpu.memory_space<semaphore_mem>> -> memref<!tpu.dma_semaphore, #tpu.memory_space<semaphore_mem>>
      tpu.enqueue_dma source(%22 : memref<1x128xf32, #tpu.memory_space<any>>) target(%23 : memref<1x128xf32, #tpu.memory_space<vmem>>) target_semaphore(%25 : memref<!tpu.dma_semaphore, #tpu.memory_space<semaphore_mem>>)
    }
    %c16_i32_1 = arith.constant 16 : i32
    %c0_i32_2 = arith.constant 0 : i32
    %c16_i32_3 = arith.constant 16 : i32
    %2 = arith.addi %c0_i32_2, %c16_i32_3 : i32
    %c1_i32_4 = arith.constant 1 : i32
    scf.for %arg6 = %c0_i32_2 to %2 step %c1_i32_4  : i32 {
      %c1_i32_9 = arith.constant 1 : i32
      %7 = arith.muli %arg6, %c1_i32_9 : i32
      %c0_i32_10 = arith.constant 0 : i32
      %8 = arith.addi %c0_i32_10, %7 : i32
      %c8_i32 = arith.constant 8 : i32
      %c0_i32_11 = arith.constant 0 : i32
      %9 = arith.cmpi eq, %c8_i32, %c0_i32_11 : i32
      %c1_i32_12 = arith.constant 1 : i32
      %10 = arith.select %9, %c1_i32_12, %c8_i32 : i32
      %11 = arith.remsi %8, %10 : i32
      %c0_i32_13 = arith.constant 0 : i32
      %12 = arith.cmpi ne, %11, %c0_i32_13 : i32
      %c0_i32_14 = arith.constant 0 : i32
      %13 = arith.cmpi slt, %11, %c0_i32_14 : i32
      %c0_i32_15 = arith.constant 0 : i32
      %14 = arith.cmpi slt, %10, %c0_i32_15 : i32
      %15 = arith.xori %13, %14 : i1
      %16 = arith.andi %15, %12 : i1
      %17 = arith.addi %11, %10 : i32
      %18 = arith.select %16, %17, %11 : i32
      %c0_i32_16 = arith.constant 0 : i32
      %c0_i32_17 = arith.constant 0 : i32
      %19 = tpu.memref_slice %arg2[%c0_i32_16, %c0_i32_17] : memref<11x128xf32, #tpu.memory_space<any>> -> memref<1x128xf32, #tpu.memory_space<any>>
      %c0_i32_18 = arith.constant 0 : i32
      %20 = tpu.memref_slice %arg4[%8, %c0_i32_18] : memref<16x128xf32, #tpu.memory_space<vmem>> -> memref<1x128xf32, #tpu.memory_space<vmem>>
      %21 = tpu.memref_slice %arg5[%18] : memref<8x!tpu.dma_semaphore, #tpu.memory_space<semaphore_mem>> -> memref<1x!tpu.dma_semaphore, #tpu.memory_space<semaphore_mem>>
      %22 = tpu.memref_squeeze %21 : memref<1x!tpu.dma_semaphore, #tpu.memory_space<semaphore_mem>> -> memref<!tpu.dma_semaphore, #tpu.memory_space<semaphore_mem>>
      tpu.wait_dma2 semaphore(%22 : memref<!tpu.dma_semaphore, #tpu.memory_space<semaphore_mem>>) src(%19 : memref<1x128xf32, #tpu.memory_space<any>>) dst(%20 : memref<1x128xf32, #tpu.memory_space<vmem>>)
    }
    %c16_i32_5 = arith.constant 16 : i32
    %c0 = arith.constant 0 : index
    %c0_6 = arith.constant 0 : index
    %3 = vector.load %arg4[%c0, %c0_6] : memref<16x128xf32, #tpu.memory_space<vmem>>, vector<16x128xf32>
    %cst = arith.constant 5.65685415 : f32
    %4 = vector.broadcast %cst : f32 to vector<16x128xf32>
    %5 = arith.mulf %3, %4 : vector<16x128xf32>
    %c0_7 = arith.constant 0 : index
    %c0_8 = arith.constant 0 : index
    %6 = vector.load %arg3[%c0_7, %c0_8] : memref<16x128xf32, #tpu.memory_space<vmem>>, vector<16x128xf32>
    tpu.vector_store %arg3[%c0_7, %c0_8], %5 {strides = array<i32>} : memref<16x128xf32, #tpu.memory_space<vmem>>, vector<16x128xf32>,
    return
  }
  func.func @transform_1(%arg0: i32, %arg1: memref<16xi32, #tpu.memory_space<smem>>) -> (i32, i32) {
    %c0_i32 = arith.constant 0 : i32
    %c0_i32_0 = arith.constant 0 : i32
    return %arg0, %c0_i32 : i32, i32
  }
}

</mosaic_0001>

<llo_original>
// kernel: tpu_custom_call.1
$region0: #{tpu_custom_call.1}
  #allocation0 [shape = 'u32[]', space=smem, size = 0x4, offset = 0x4, fixed_abs, tag = 'smem constant byte address 0x4 - core index']
  #allocation1 [shape = 'u32[144,128]{1,0:T(1,128)}', space=vmem, size = 0x12000, scoped, tag = 'internal scratch']
  #allocation2 [shape = 'f32[16,128]{1,0:T(8,128)}', space=vmem, size = 0x2000, scoped, tag = 'scratch operand']
  #allocation3 [shape = 's32[8]{0}', space=sflag, size = 0x20, scoped, tag = 'scratch operand']
  #allocation4 [shape = 's32[1]{0}', space=sflag, size = 0x4, scoped, tag = 'scoped memory for tpu_custom_call.1']
  #allocation5 [shape = 'u8[512]{0}', space=smem, size = 0x200, scoped, tag = 'prefetched SMEM operand 0']
  #allocation8 [shape = 's32[]', space=sflag, size = 0x4, offset = 0, fixed_abs, tag = 'sflag constant byte address 0x0 - dummy sync flag']
  #allocation9 [shape = 's32[]', space=sflag, size = 0x4, offset = 0, fixed_abs, tag = 'sflag constant byte address 0x0 - dummy sync flag']
  #allocation10 [shape = 'u32[]', space=smem, size = 0x4, offset = 0x44, fixed_abs, tag = 'smem constant byte address 0x44 - assertion arg 0']
  #allocation11 [shape = 'u32[]', space=smem, size = 0x4, offset = 0x48, fixed_abs, tag = 'smem constant byte address 0x48 - assertion arg 1']
  %s0 = inlined_call_operand.hbm [shape: s32[16], index: 0, kind: input, shape index: {}]
  %s1 = inlined_call_operand.hbm [shape: f32[11,128], index: 1, kind: input, shape index: {}]
  %s2 = inlined_call_operand.hbm [shape: f32[16,128], index: 2, kind: output, shape index: {}]
  %s3 = sld [smem:[#allocation0]]
  $region28: #{tpu_custom_call.1} parent=0
    _
  %s5 = ssub.s32 1, %s3
  %s6 = scalar_select 0, %s5, %s3
  %8 = dma.hbm_to_smem %s0, 16, [#allocation5], [#allocation4]
  %9 = dma.done [#allocation4], 16
  %10 = sfence
  $region1: #{tpu_custom_call.1} parent=0
    #allocation6 [shape = 'u8[8192]{0}', space=vmem, size = 0x2000, scoped, tag = 'output window, operand 0, single buffered']
    #allocation7 [shape = 's32[1]{0}', space=sflag, size = 0x4, scoped, tag = 'scoped memory for tpu_custom_call.1']
    %11 = vsyncpa [#allocation7], 0
    %s12 = smul.u32 0, 16
    loop: start=0, step=1, limit=16
    $region2: #{tpu_custom_call.1} parent=1 // loop_pre_header
      _
    $region3: #{tpu_custom_call.1} parent=1 // loop_header
      %s14 = sphi 0, %s18
      %p15 = scmp.ge.s32.totalorder %s14, 16
    $region4: #{tpu_custom_call.1} parent=1 // loop_header_branch
      %17 = sbr.rel (%p15) target = $region8
    $region5: #{tpu_custom_call.1} parent=1 // loop_body
      %s19 = sadd.s32 %s12, %s14
      %s20 = sld [smem:[#allocation5 + %s19]]
      %p21 = scmp.lt.s32.totalorder %s14, 0
      %s22 = ssub.s32 0, %s14
      %s23 = scalar_select %p21, %s22, %s14
      %s24 = sand.u32 %s23, 7
      %s25 = ssub.s32 0, %s24
      %s26 = scalar_select %p21, %s25, %s24
      %p27 = scmp.ne.s32.totalorder %s26, 0
      %p28 = scmp.lt.s32.totalorder %s26, 0
      %p29 = pnand %p28, %p27
      %p30 = pneg %p29
      %s31 = sadd.s32 %s26, 8
      %s32 = scalar_select %p30, %s31, %s26
      %s33 = smul.addr %s20, 16
      %s34 = scalar_lea.hbm %s1, %s33
      %s35 = scalar_lea.vmem [#allocation2], %s14
      %s36 = scalar_lea.sflag [#allocation3], %s32
      // Predicated region
      $region9: #{tpu_custom_call.1} parent=5 // pred_check
        _
      $region10: #{tpu_custom_call.1} parent=5 // pred_check_branch
        %38 = sbr.rel target = $region12
      $region11: #{tpu_custom_call.1} parent=5 // pred_region
        %39 = sst [smem:[#allocation10]] [#allocation9]
        %40 = sst [smem:[#allocation11]] [#allocation8]
      $region12: #{tpu_custom_call.1} parent=5 // pred_fallthru
        _
      %42 = shalt.err (0)
      %s44 = sshll.u32 %s35, 4
      %s45 = int_to_ptr.vmem [resolvable:$true] %s44
      %47 = dma.hbm_to_vmem [thread:$0]  %s34, 16, %s45, %s36
    $region6: #{tpu_custom_call.1} parent=1 // loop_footer
      %s18 = sadd.s32 1, %s14
    $region7: #{tpu_custom_call.1} parent=1 // loop_footer_branch
      %13 = sbr.rel target = $region3
    $region8: #{tpu_custom_call.1} parent=1 // loop_exit
      _
    loop: start=0, step=1, limit=16
    $region13: #{tpu_custom_call.1} parent=1 // loop_pre_header
      _
    $region14: #{tpu_custom_call.1} parent=1 // loop_header
      %s49 = sphi 0, %s53
      %p50 = scmp.ge.s32.totalorder %s49, 16
    $region15: #{tpu_custom_call.1} parent=1 // loop_header_branch
      %52 = sbr.rel (%p50) target = $region19
    $region16: #{tpu_custom_call.1} parent=1 // loop_body
      %p54 = scmp.lt.s32.totalorder %s49, 0
      %s55 = ssub.s32 0, %s49
      %s56 = scalar_select %p54, %s55, %s49
      %s57 = sand.u32 %s56, 7
      %s58 = ssub.s32 0, %s57
      %s59 = scalar_select %p54, %s58, %s57
      %p60 = scmp.ne.s32.totalorder %s59, 0
      %p61 = scmp.lt.s32.totalorder %s59, 0
      %p62 = pnand %p61, %p60
      %p63 = pneg %p62
      %s64 = sadd.s32 %s59, 8
      %s65 = scalar_select %p63, %s64, %s59
      %s66 = scalar_lea.sflag [#allocation3], %s65
      %s67 = smul.u32 1, 1
      %s68 = sshll.u32 %s67, 4
      %69 = dma.done %s66, %s68
    $region17: #{tpu_custom_call.1} parent=1 // loop_footer
      %s53 = sadd.s32 1, %s49
    $region18: #{tpu_custom_call.1} parent=1 // loop_footer_branch
      %48 = sbr.rel target = $region14
    $region19: #{tpu_custom_call.1} parent=1 // loop_exit
      _
    %v70 = vld [vmem:[#allocation2] sm:$0xff]
    %v71 = vld [vmem:[#allocation2 + $0x8] sm:$0xff]
    %v72 = vmul.f32 %v70, 5.656854
    %v73 = vmul.f32 %v71, 5.656854
    %74 = vst [vmem:[#allocation6] sm:$0xff] %v72
    %75 = vst [vmem:[#allocation6 + $0x8] sm:$0xff] %v73
    // Predicated region
    $region20: #{tpu_custom_call.1} parent=1 // pred_check
      _
    $region21: #{tpu_custom_call.1} parent=1 // pred_check_branch
      %77 = sbr.rel (0) target = $region23
    $region22: #{tpu_custom_call.1} parent=1 // pred_region
      %s79 = ssub.s32 256, 256
      %80 = vsyncadd [#allocation7], %s79
      %s81 = sshll.u32 [#allocation6], 4
      %s82 = int_to_ptr.vmem [resolvable:$true] %s81
      %87 = dma.vmem_to_hbm [thread:$0]  %s82, 256, %s2, [#allocation7], 128, 128, 8
    $region23: #{tpu_custom_call.1} parent=1 // pred_fallthru
      _
    // Predicated region
    $region24: #{tpu_custom_call.1} parent=1 // pred_check
      _
    $region25: #{tpu_custom_call.1} parent=1 // pred_check_branch
      %89 = sbr.rel (0) target = $region27
    $region26: #{tpu_custom_call.1} parent=1 // pred_region
      %90 = dma.done [#allocation7], 256
    $region27: #{tpu_custom_call.1} parent=1 // pred_fallthru
      _
    %91 = vsyncpa [#allocation7], 1
  %92 = vsyncmov [#allocation3]
  %s93 = vpop.sfrf %92
  %p94 = scmp.eq.s32.totalorder %s93, 0
  %p95 = pneg %p94
  %97 = shalt.err (%p95)
  %s98 = scalar_lea.sflag [#allocation3], 1
  %99 = vsyncmov %s98
  %s100 = vpop.sfrf %99
  %p101 = scmp.eq.s32.totalorder %s100, 0
  %p102 = pneg %p101
  %104 = shalt.err (%p102)
  %s105 = scalar_lea.sflag [#allocation3], 2
  %106 = vsyncmov %s105
  %s107 = vpop.sfrf %106
  %p108 = scmp.eq.s32.totalorder %s107, 0
  %p109 = pneg %p108
  %111 = shalt.err (%p109)
  %s112 = scalar_lea.sflag [#allocation3], 3
  %113 = vsyncmov %s112
  %s114 = vpop.sfrf %113
  %p115 = scmp.eq.s32.totalorder %s114, 0
  %p116 = pneg %p115
  %118 = shalt.err (%p116)
  %s119 = scalar_lea.sflag [#allocation3], 4
  %120 = vsyncmov %s119
  %s121 = vpop.sfrf %120
  %p122 = scmp.eq.s32.totalorder %s121, 0
  %p123 = pneg %p122
  %125 = shalt.err (%p123)
  %s126 = scalar_lea.sflag [#allocation3], 5
  %127 = vsyncmov %s126
  %s128 = vpop.sfrf %127
  %p129 = scmp.eq.s32.totalorder %s128, 0
  %p130 = pneg %p129
  %132 = shalt.err (%p130)
  %s133 = scalar_lea.sflag [#allocation3], 6
  %134 = vsyncmov %s133
  %s135 = vpop.sfrf %134
  %p136 = scmp.eq.s32.totalorder %s135, 0
  %p137 = pneg %p136
  %139 = shalt.err (%p137)
  %s140 = scalar_lea.sflag [#allocation3], 7
  %141 = vsyncmov %s140
  %s142 = vpop.sfrf %141
  %p143 = scmp.eq.s32.totalorder %s142, 0
  %p144 = pneg %p143
  %146 = shalt.err (%p144)

</llo_original>
